<compile_context>
chip_gen: v7x
topology: tpu7x:2x2x1
jax: 0.10.0
libtpu: 0.0.40
codegen_flags: <defaults>
</compile_context>

<pallas_src>
import functools

import jax
import jax.numpy as jnp
from jax.experimental import pallas as pl
from jax.experimental.pallas import tpu as pltpu


def _round_up(x, m):
    return (x + m - 1) // m * m


def _cdiv(a, b):
    return (a + b - 1) // b


def _vmem_capacity_bytes():
    """Physical VMEM per core; conservative 64 MiB (v7x-safe) if query fails."""
    try:
        cap = getattr(pltpu.get_tpu_info(), "vmem_capacity_bytes", None)
        if cap:
            return int(cap)
    except Exception:
        pass
    return 64 * 1024 * 1024


def _bspec(shape, index_map, buffers=None):
    """BlockSpec with optional pipeline depth; degrades gracefully if the
    running JAX does not support pipeline_mode / pl.Buffered."""
    if buffers is not None and hasattr(pl, "Buffered"):
        try:
            return pl.BlockSpec(shape, index_map,
                                pipeline_mode=pl.Buffered(buffers))
        except TypeError:
            pass
    return pl.BlockSpec(shape, index_map)


# ---------------------------------------------------------------------------
# Kernels
# ---------------------------------------------------------------------------
def _mlp_fused_kernel(x_ref, w1_ref, b1_ref, w2_ref, b2_ref, o_ref):
    """Linear -> LeakyReLU(0.01) -> Linear on one row tile; whole width resident.

    Matmuls feed native-dtype operands to the MXU with an f32 accumulator;
    bias add and LeakyReLU stay on the f32 accumulator (VPU).
    """
    h = jnp.dot(x_ref[...], w1_ref[...], preferred_element_type=jnp.float32)
    h = h + b1_ref[...].astype(jnp.float32)
    h = jnp.where(h > 0, h, 0.01 * h)            # LeakyReLU, torch default 0.01
    o = jnp.dot(h.astype(w2_ref.dtype), w2_ref[...],
                preferred_element_type=jnp.float32)
    o = o + b2_ref[...].astype(jnp.float32)
    o_ref[...] = o.astype(o_ref.dtype)


def _mlp_coltiled_kernel(x_ref, w1_ref, b1_ref, w2_ref, b2_ref, o_ref, h_ref):
    """Column-tiled second linear for large H.

    The hidden activations of the current row tile are computed once (first
    column step) and kept in VMEM scratch across the inner column axis.
    """
    @pl.when(pl.program_id(1) == 0)
    def _():
        h = jnp.dot(x_ref[...], w1_ref[...], preferred_element_type=jnp.float32)
        h = h + b1_ref[...].astype(jnp.float32)
        h = jnp.where(h > 0, h, 0.01 * h)
        h_ref[...] = h.astype(h_ref.dtype)

    o = jnp.dot(h_ref[...], w2_ref[...], preferred_element_type=jnp.float32)
    o = o + b2_ref[...].astype(jnp.float32)
    o_ref[...] = o.astype(o_ref.dtype)


# ---------------------------------------------------------------------------
# Wrapper
# ---------------------------------------------------------------------------
@functools.partial(jax.jit,
                   static_argnames=("input_channels", "patch_size", "col_tile"))
def patch_forward(x, w1, b1, w2, b2, *, input_channels, patch_size,
                  col_tile=None):
    """x: (B, S, latent_dim) -> (B, S, C, P, P), matching Patch.forward.

    w1: (latent_dim, H), w2: (H, H) with H = C*P*P (already transposed vs
    torch, so the kernel computes x @ w == x @ W.T in torch terms).
    `col_tile` (static) forces a given output-column tile width (testing /
    tuning); by default column tiling only kicks in when w2 would not fit
    VMEM alongside a reasonable row tile.
    """
    B, S, D = x.shape
    C, P = input_channels, patch_size
    H = C * P * P
    N = B * S

    x_item = jnp.dtype(x.dtype).itemsize
    w_item = jnp.dtype(w1.dtype).itemsize
    h_dtype = w2.dtype                    # 2nd matmul runs in the weight dtype
    h_item = jnp.dtype(h_dtype).itemsize

    # ---- Generation-aware VMEM budget --------------------------------------
    vmem_cap = _vmem_capacity_bytes()
    budget = vmem_cap * 3 // 4            # ~48 MiB on v7x, ~96 MiB on v5e/v6e
    limit_cap = int(vmem_cap * 0.85)      # headroom for Mosaic internal scratch
    row_cap = 1024 if vmem_cap >= (96 << 20) else 512
    min_rows = {4: 8, 2: 16, 1: 32}.get(x_item, 8)   # dtype-aware sublane floor

    def rows_for(tn, n_col):
        """How many rows fit for a given output-column tile width."""
        w_bufs = 1 if n_col == 1 else 2   # invariant blocks are single-buffered
        weights = (D * H + H) * w_item + w_bufs * (H + 1) * tn * w_item
        per_row = 3 * D * x_item + 2 * tn * x_item
        if n_col > 1:
            per_row += H * h_item         # hidden scratch
        avail = budget - weights
        return avail // per_row if avail > 0 else 0

    # ---- Output-column tiling (only when w2 would not fit) -----------------
    if col_tile is not None:
        tn = int(col_tile)
        n_col = _cdiv(H, tn)
    else:
        tn, n_col = H, 1
        if rows_for(H, 1) < 128:
            for cand in (2048, 1024, 512, 256, 128):
                if cand >= H:
                    continue
                tn, n_col = cand, _cdiv(H, cand)
                if rows_for(tn, n_col) >= 256:
                    break
    Hout = tn * n_col                     # == H unless column tiling pads

    # ---- Row tile -----------------------------------------------------------
    row_tile = min(row_cap, max(int(rows_for(tn, n_col)), min_rows))
    if row_tile >= 256:
        row_tile = (row_tile // 256) * 256
    elif row_tile >= 128:
        row_tile = (row_tile // 128) * 128
    else:
        row_tile = max((row_tile // min_rows) * min_rows, min_rows)
    # Tiny problems collapse to a single block (no pipeline overhead).
    row_tile = min(row_tile, _round_up(N, min_rows))
    # Keep >= 2 row steps for larger problems so both v7x TensorCores get work.
    if N >= 512:
        row_tile = min(row_tile, max(_round_up(_cdiv(N, 2), 256), 256))
    n_row = _cdiv(N, row_tile)

    # ---- Operands: no wrapper-side HBM passes in the common case -----------
    x2d = x.reshape(N, D)                 # contiguous view, free
    b1r = b1.reshape(1, H)
    if Hout != H:                         # only for column-tiled, non-aligned H
        w2u = jnp.pad(w2, ((0, 0), (0, Hout - H)))
        b2r = jnp.pad(b2.reshape(1, H), ((0, 0), (0, Hout - H)))
    else:
        w2u = w2
        b2r = b2.reshape(1, H)

    # ---- Cost estimate + VMEM limit -----------------------------------------
    flops = 2 * N * D * H + 2 * N * H * Hout
    bytes_accessed = (N * D * x_item + N * Hout * x_item
                      + (D * H + H * Hout + H + Hout) * w_item)
    cost = pl.CostEstimate(flops=flops, transcendentals=0,
                           bytes_accessed=bytes_accessed)

    weight_bytes = ((D * H + H) * w_item
                    + (1 if n_col == 1 else 2) * (H + 1) * tn * w_item)
    per_row_bytes = 3 * D * x_item + 2 * tn * x_item \
        + (H * h_item if n_col > 1 else 0)
    vmem_needed = weight_bytes + row_tile * per_row_bytes + (4 << 20)
    vmem_limit = int(min(max(vmem_needed, 32 << 20), limit_cap))

    if n_col == 1:
        grid_spec = pltpu.PrefetchScalarGridSpec(
            num_scalar_prefetch=0,
            grid=(n_row,),
            in_specs=[
                _bspec((row_tile, D), lambda i: (i, 0),
                       buffers=3 if n_row >= 3 else None),     # x row tile
                _bspec((D, H), lambda i: (0, 0), buffers=1),   # w1 (invariant)
                _bspec((1, H), lambda i: (0, 0), buffers=1),   # b1
                _bspec((H, H), lambda i: (0, 0), buffers=1),   # w2 (invariant)
                _bspec((1, H), lambda i: (0, 0), buffers=1),   # b2
            ],
            out_specs=pl.BlockSpec((row_tile, H), lambda i: (i, 0)),
        )
        kernel = _mlp_fused_kernel
        dims = ("parallel",)
    else:
        grid_spec = pltpu.PrefetchScalarGridSpec(
            num_scalar_prefetch=0,
            grid=(n_row, n_col),
            in_specs=[
                _bspec((row_tile, D), lambda i, j: (i, 0)),          # x
                _bspec((D, H), lambda i, j: (0, 0), buffers=1),      # w1
                _bspec((1, H), lambda i, j: (0, 0), buffers=1),      # b1
                pl.BlockSpec((H, tn), lambda i, j: (0, j)),          # w2 cols
                pl.BlockSpec((1, tn), lambda i, j: (0, j)),          # b2 cols
            ],
            out_specs=pl.BlockSpec((row_tile, tn), lambda i, j: (i, j)),
            scratch_shapes=[pltpu.VMEM((row_tile, H), h_dtype)],
        )
        kernel = _mlp_coltiled_kernel
        dims = ("parallel", "arbitrary")   # scratch reuse across col steps

    out2d = pl.pallas_call(
        kernel,
        out_shape=jax.ShapeDtypeStruct((N, Hout), x.dtype),
        grid_spec=grid_spec,
        compiler_params=pltpu.CompilerParams(
            dimension_semantics=dims, vmem_limit_bytes=vmem_limit),
        cost_estimate=cost,
    )(x2d, w1, b1r, w2u, b2r)

    if Hout != H:
        out2d = out2d[:, :H]
    return out2d.reshape(B, S, C, P, P)


# ---------------------------------------------------------------------------
# Init / reference / test
# ---------------------------------------------------------------------------
def _init_linear(key, fan_in, fan_out, dtype=jnp.float32):
    """PyTorch-style Linear init: U(-1/sqrt(fan_in), 1/sqrt(fan_in)).

    Returned weight is (fan_in, fan_out), i.e. already transposed so the
    kernel computes x @ w (equivalent to torch's x @ W.T).
    """
    kw, kb = jax.random.split(key)
    bound = 1.0 / jnp.sqrt(fan_in)
    w = jax.random.uniform(kw, (fan_in, fan_out), dtype, -bound, bound)
    b = jax.random.uniform(kb, (fan_out,), dtype, -bound, bound)
    return w, b


def _reference_forward(x, w1, b1, w2, b2, C, P):
    """Pure-JAX reference of Patch.forward for the correctness check."""
    B, S, D = x.shape
    h = x.reshape(B * S, D) @ w1 + b1
    h = jnp.where(h > 0, h, 0.01 * h)
    o = h @ w2 + b2
    return o.reshape(B, S, C, P, P)


if __name__ == "__main__":
    key = jax.random.PRNGKey(0)

    def run_case(case_key, B, S, C, P, D, col_tile=None):
        kx, k1, k2 = jax.random.split(case_key, 3)
        H = C * P * P

        # Quantize inputs to the bf16 grid so MXU pass-count differences
        # between the kernel and the jnp reference barely affect the check.
        def q(a):
            return a.astype(jnp.bfloat16).astype(jnp.float32)

        x = q(jax.random.normal(kx, (B, S, D), jnp.float32))
        w1, b1 = _init_linear(k1, D, H)
        w2, b2 = _init_linear(k2, H, H)
        w1, b1, w2, b2 = q(w1), q(b1), q(w2), q(b2)

        out = patch_forward(x, w1, b1, w2, b2, input_channels=C, patch_size=P,
                            col_tile=col_tile)
        out = jax.block_until_ready(out)
        ref = _reference_forward(x, w1, b1, w2, b2, C, P)
        assert out.shape == (B, S, C, P, P)
        # Tolerance covers TPU MXU default-precision differences on f32 dots.
        assert bool(jnp.allclose(out, ref, atol=2e-2, rtol=2e-2)), \
            "mismatch vs reference"

    # Fused single-column-block path (H = 64).
    run_case(jax.random.fold_in(key, 0), B=2, S=8, C=4, P=4, D=32)
    # Column-tiled path (H = 256, forced 128-wide output column tiles).
    run_case(jax.random.fold_in(key, 1), B=2, S=8, C=4, P=8, D=32, col_tile=128)

    print("KERNEL_OK")
</pallas_src>

<mosaic_0001>
module attributes {stable_mosaic.version = 11 : i64} {
  func.func @_mlp_fused_kernel(%arg0: i32, %arg1: memref<16x32xf32, #tpu.memory_space<vmem>>, %arg2: memref<32x64xf32, #tpu.memory_space<vmem>>, %arg3: memref<1x64xf32, #tpu.memory_space<vmem>>, %arg4: memref<64x64xf32, #tpu.memory_space<vmem>>, %arg5: memref<1x64xf32, #tpu.memory_space<vmem>>, %arg6: memref<16x64xf32, #tpu.memory_space<vmem>>) attributes {dimension_semantics = [#tpu.dimension_semantics<parallel>], iteration_bounds = array<i64: 1>, scalar_prefetch = 0 : i64, scratch_operands = 0 : i64, tpu.core_type = #tpu.core_type<tc>, window_params = [{transform_indices = @transform_0, window_bounds = array<i64: 16, 32>}, {pipeline_mode = #tpu.pipeline_mode<synchronous>, transform_indices = @transform_1, window_bounds = array<i64: 32, 64>}, {pipeline_mode = #tpu.pipeline_mode<synchronous>, transform_indices = @transform_2, window_bounds = array<i64: 1, 64>}, {pipeline_mode = #tpu.pipeline_mode<synchronous>, transform_indices = @transform_3, window_bounds = array<i64: 64, 64>}, {pipeline_mode = #tpu.pipeline_mode<synchronous>, transform_indices = @transform_4, window_bounds = array<i64: 1, 64>}, {transform_indices = @transform_5, window_bounds = array<i64: 16, 64>}]} {
    %c0 = arith.constant 0 : index
    %c0_0 = arith.constant 0 : index
    %0 = vector.load %arg1[%c0, %c0_0] : memref<16x32xf32, #tpu.memory_space<vmem>>, vector<16x32xf32>
    %c0_1 = arith.constant 0 : index
    %c0_2 = arith.constant 0 : index
    %1 = vector.load %arg2[%c0_1, %c0_2] : memref<32x64xf32, #tpu.memory_space<vmem>>, vector<32x64xf32>
    %cst = arith.constant dense<0.000000e+00> : vector<16x64xf32>
    %2 = tpu.matmul %0, %1, %cst {dimension_numbers = #tpu.dot_dimension_numbers<[1], [0], [0], [1], [0, 0, 1, 1], [], []>} : vector<16x32xf32>, vector<32x64xf32>, vector<16x64xf32> -> vector<16x64xf32>
    %c0_3 = arith.constant 0 : index
    %c0_4 = arith.constant 0 : index
    %3 = vector.load %arg3[%c0_3, %c0_4] : memref<1x64xf32, #tpu.memory_space<vmem>>, vector<1x64xf32>
    %4 = vector.broadcast %3 : vector<1x64xf32> to vector<16x64xf32>
    %5 = arith.addf %2, %4 : vector<16x64xf32>
    %cst_5 = arith.constant 0.000000e+00 : f32
    %6 = vector.broadcast %cst_5 : f32 to vector<16x64xf32>
    %7 = arith.cmpf ogt, %5, %6 : vector<16x64xf32>
    %cst_6 = arith.constant 0.00999999977 : f32
    %8 = vector.broadcast %cst_6 : f32 to vector<16x64xf32>
    %9 = arith.mulf %8, %5 : vector<16x64xf32>
    %10 = arith.select %7, %5, %9 : vector<16x64xi1>, vector<16x64xf32>
    %c0_7 = arith.constant 0 : index
    %c0_8 = arith.constant 0 : index
    %11 = vector.load %arg4[%c0_7, %c0_8] : memref<64x64xf32, #tpu.memory_space<vmem>>, vector<64x64xf32>
    %cst_9 = arith.constant dense<0.000000e+00> : vector<16x64xf32>
    %12 = tpu.matmul %10, %11, %cst_9 {dimension_numbers = #tpu.dot_dimension_numbers<[1], [0], [0], [1], [0, 0, 1, 1], [], []>} : vector<16x64xf32>, vector<64x64xf32>, vector<16x64xf32> -> vector<16x64xf32>
    %c0_10 = arith.constant 0 : index
    %c0_11 = arith.constant 0 : index
    %13 = vector.load %arg5[%c0_10, %c0_11] : memref<1x64xf32, #tpu.memory_space<vmem>>, vector<1x64xf32>
    %14 = vector.broadcast %13 : vector<1x64xf32> to vector<16x64xf32>
    %15 = arith.addf %12, %14 : vector<16x64xf32>
    %c0_12 = arith.constant 0 : index
    %c0_13 = arith.constant 0 : index
    %16 = vector.load %arg6[%c0_12, %c0_13] : memref<16x64xf32, #tpu.memory_space<vmem>>, vector<16x64xf32>
    tpu.vector_store %arg6[%c0_12, %c0_13], %15 {strides = array<i32>} : memref<16x64xf32, #tpu.memory_space<vmem>>, vector<16x64xf32>,
    return
  }
  func.func @transform_0(%arg0: i32) -> (i32, i32) {
    %c0_i32 = arith.constant 0 : i32
    %c0_i32_0 = arith.constant 0 : i32
    return %arg0, %c0_i32 : i32, i32
  }
  func.func @transform_1(%arg0: i32) -> (i32, i32) {
    %c0_i32 = arith.constant 0 : i32
    %c0_i32_0 = arith.constant 0 : i32
    %c0_i32_1 = arith.constant 0 : i32
    return %c0_i32, %c0_i32_0 : i32, i32
  }
  func.func @transform_2(%arg0: i32) -> (i32, i32) {
    %c0_i32 = arith.constant 0 : i32
    %c0_i32_0 = arith.constant 0 : i32
    %c0_i32_1 = arith.constant 0 : i32
    return %c0_i32, %c0_i32_0 : i32, i32
  }
  func.func @transform_3(%arg0: i32) -> (i32, i32) {
    %c0_i32 = arith.constant 0 : i32
    %c0_i32_0 = arith.constant 0 : i32
    %c0_i32_1 = arith.constant 0 : i32
    return %c0_i32, %c0_i32_0 : i32, i32
  }
  func.func @transform_4(%arg0: i32) -> (i32, i32) {
    %c0_i32 = arith.constant 0 : i32
    %c0_i32_0 = arith.constant 0 : i32
    %c0_i32_1 = arith.constant 0 : i32
    return %c0_i32, %c0_i32_0 : i32, i32
  }
  func.func @transform_5(%arg0: i32) -> (i32, i32) {
    %c0_i32 = arith.constant 0 : i32
    %c0_i32_0 = arith.constant 0 : i32
    return %arg0, %c0_i32 : i32, i32
  }
}

</mosaic_0001>

<llo_original>
// kernel: patch_forward.1
$region0: #{patch_forward.1}
  #allocation0 [shape = 'u32[]', space=smem, size = 0x4, offset = 0x4, fixed_abs, tag = 'smem constant byte address 0x4 - core index']
  #allocation1 [shape = 'u32[144,128]{1,0:T(1,128)}', space=vmem, size = 0x12000, scoped, tag = 'internal scratch']
  %s0 = inlined_call_operand.hbm [shape: f32[16,32], index: 0, kind: input, shape index: {}]
  %s1 = inlined_call_operand.hbm [shape: f32[32,64], index: 1, kind: input, shape index: {}]
  %s2 = inlined_call_operand.vmem [shape: f32[1,64], index: 2, kind: input, shape index: {}]
  %s3 = inlined_call_operand.hbm [shape: f32[64,64], index: 3, kind: input, shape index: {}]
  %s4 = inlined_call_operand.vmem [shape: f32[1,64], index: 4, kind: input, shape index: {}]
  %s5 = inlined_call_operand.vmem [shape: f32[16,64], index: 5, kind: output, shape index: {}]
  %s6 = sld [smem:[#allocation0]]
  $region42: #{patch_forward.1} parent=0
    _
  %s8 = ssub.s32 1, %s6
  %s9 = scalar_select 0, %s8, %s6
  $region1: #{patch_forward.1} parent=0
    #allocation2 [shape = 'u8[8192]{0}', space=vmem, size = 0x2000, scoped, tag = 'input window, operand 0, single buffered']
    #allocation3 [shape = 's32[1]{0}', space=sflag, size = 0x4, scoped, tag = 'scoped memory for patch_forward.1']
    #allocation4 [shape = 'u8[16384]{0}', space=vmem, size = 0x4000, scoped, tag = 'input window, operand 1, single buffered']
    #allocation5 [shape = 's32[1]{0}', space=sflag, size = 0x4, scoped, tag = 'scoped memory for patch_forward.1']
    #allocation6 [shape = 'u8[32768]{0}', space=vmem, size = 0x8000, scoped, tag = 'input window, operand 3, single buffered']
    %10 = vsyncpa [#allocation3], 0
    %11 = vsyncpa [#allocation5], 0
    // Predicated region
    $region2: #{patch_forward.1} parent=1 // pred_check
      _
    $region3: #{patch_forward.1} parent=1 // pred_check_branch
      %13 = sbr.rel (0) target = $region5
    $region4: #{patch_forward.1} parent=1 // pred_region
      %s15 = ssub.s32 256, 256
      %16 = vsyncadd [#allocation3], %s15
      %s17 = sshll.u32 [#allocation2], 4
      %s18 = int_to_ptr.vmem [resolvable:$true] %s17
      %23 = dma.hbm_to_vmem [thread:$0]  %s0, 256, %s18, [#allocation3], 128, 128, 8
    $region5: #{patch_forward.1} parent=1 // pred_fallthru
      _
    // Predicated region
    $region6: #{patch_forward.1} parent=1 // pred_check
      _
    $region7: #{patch_forward.1} parent=1 // pred_check_branch
      %25 = sbr.rel (0) target = $region9
    $region8: #{patch_forward.1} parent=1 // pred_region
      %s27 = ssub.s32 512, 512
      %28 = vsyncadd [#allocation5], %s27
      %s29 = sshll.u32 [#allocation4], 4
      %s30 = int_to_ptr.vmem [resolvable:$true] %s29
      %35 = dma.hbm_to_vmem [thread:$0]  %s1, 512, %s30, [#allocation5], 128, 128, 8
    $region9: #{patch_forward.1} parent=1 // pred_fallthru
      _
    // Predicated region
    $region10: #{patch_forward.1} parent=1 // pred_check
      _
    $region11: #{patch_forward.1} parent=1 // pred_check_branch
      %37 = sbr.rel (0) target = $region13
    $region12: #{patch_forward.1} parent=1 // pred_region
      _
    $region13: #{patch_forward.1} parent=1 // pred_fallthru
      _
    // Predicated region
    $region14: #{patch_forward.1} parent=1 // pred_check
      _
    $region15: #{patch_forward.1} parent=1 // pred_check_branch
      %39 = sbr.rel (0) target = $region17
    $region16: #{patch_forward.1} parent=1 // pred_region
      %s41 = ssub.s32 1024, 1024
      %42 = vsyncadd [#allocation5], %s41
      %s43 = sshll.u32 [#allocation6], 4
      %s44 = int_to_ptr.vmem [resolvable:$true] %s43
      %49 = dma.hbm_to_vmem [thread:$0]  %s3, 1024, %s44, [#allocation5], 128, 128, 8
    $region17: #{patch_forward.1} parent=1 // pred_fallthru
      _
    // Predicated region
    $region18: #{patch_forward.1} parent=1 // pred_check
      _
    $region19: #{patch_forward.1} parent=1 // pred_check_branch
      %51 = sbr.rel (0) target = $region21
    $region20: #{patch_forward.1} parent=1 // pred_region
      _
    $region21: #{patch_forward.1} parent=1 // pred_fallthru
      _
    // Predicated region
    $region22: #{patch_forward.1} parent=1 // pred_check
      _
    $region23: #{patch_forward.1} parent=1 // pred_check_branch
      %53 = sbr.rel (0) target = $region25
    $region24: #{patch_forward.1} parent=1 // pred_region
      %54 = dma.done [#allocation3], 256
    $region25: #{patch_forward.1} parent=1 // pred_fallthru
      _
    // Predicated region
    $region26: #{patch_forward.1} parent=1 // pred_check
      _
    $region27: #{patch_forward.1} parent=1 // pred_check_branch
      %56 = sbr.rel (0) target = $region29
    $region28: #{patch_forward.1} parent=1 // pred_region
      %57 = dma.done [#allocation5], 512
    $region29: #{patch_forward.1} parent=1 // pred_fallthru
      _
    // Predicated region
    $region30: #{patch_forward.1} parent=1 // pred_check
      _
    $region31: #{patch_forward.1} parent=1 // pred_check_branch
      %59 = sbr.rel (0) target = $region33
    $region32: #{patch_forward.1} parent=1 // pred_region
      %60 = dma.done [#allocation5], 1024
    $region33: #{patch_forward.1} parent=1 // pred_fallthru
      _
    %v61 = vld [vmem:[#allocation2] sm:$0xff]
    %v62 = vld [vmem:[#allocation2 + $0x8] sm:$0xff]
    %v63 = vld [vmem:[#allocation4] sm:$0xff]
    %v64 = vld [vmem:[#allocation4 + $0x8] sm:$0xff]
    %v65 = vld [vmem:[#allocation4 + $0x10] sm:$0xff]
    %v66 = vld [vmem:[#allocation4 + $0x18] sm:$0xff]
    %v67 = vld [vmem:[%s2] sm:$0x1]
    %v69 = vlaneseq
    %v70 = vshrl.u32 %v69, 7
    %v71 = vsub.s32 0, %v70
    %v72 = vrot.slane %v67, %v71
    %vm74 = vcmask 261120
    %v76 = vsel %vm74, %v61, 0
    %v79 = vsel %vm74, %v62, 0
    %81 = vmatprep.subr.mxu0 0.0
    %82 = vmatpush1.msra.mxu0 %v63
    %83 = vmatprep.subr.mxu0 0.0
    %84 = vmatpush1.msra.mxu0 %v64
    %85 = vmatprep.subr.mxu0 0.0
    %86 = vmatpush1.msra.mxu0 %v65
    %87 = vmatprep.subr.mxu0 0.0
    %88 = vmatpush1.msra.mxu0 %v66
    %89 = vmatprep.subr.mxu0 0.0
    %90 = vmatpush1.msra.mxu0 0.0
    %91 = vmatprep.subr.mxu0 0.0
    %92 = vmatpush1.msra.mxu0 0.0
    %93 = vmatprep.subr.mxu0 0.0
    %94 = vmatpush1.msra.mxu0 0.0
    %95 = vmatprep.subr.mxu0 0.0
    %96 = vmatpush1.msra.mxu0 0.0
    %97 = vmatprep.subr.mxu0 0.0
    %98 = vmatpush1.msra.mxu0 0.0
    %99 = vmatprep.subr.mxu0 0.0
    %100 = vmatpush1.msra.mxu0 0.0
    %101 = vmatprep.subr.mxu0 0.0
    %102 = vmatpush1.msra.mxu0 0.0
    %103 = vmatprep.subr.mxu0 0.0
    %104 = vmatpush1.msra.mxu0 0.0
    %105 = vmatprep.subr.mxu0 0.0
    %106 = vmatpush1.msra.mxu0 0.0
    %107 = vmatprep.subr.mxu0 0.0
    %108 = vmatpush1.msra.mxu0 0.0
    %109 = vmatprep.subr.mxu0 0.0
    %110 = vmatpush1.msra.mxu0 0.0
    %111 = vmatprep.subr.mxu0 0.0
    %112 = vmatpush1.msra.mxu0 0.0
    %113 = vmatprep.subr.mxu0 0.0
    %114 = vmatpush1.msra.mxu0 0.0
    %115 = vmatprep.subr.mxu0 0.0
    %116 = vmatpush1.msra.mxu0 0.0
    %117 = vmatprep.subr.mxu0 0.0
    %118 = vmatpush1.msra.mxu0 0.0
    %119 = vmatprep.subr.mxu0 0.0
    %120 = vmatpush1.msra.mxu0 0.0
    %121 = vmatprep.subr.mxu0 0.0
    %122 = vmatpush1.msra.mxu0 0.0
    %123 = vmatprep.subr.mxu0 0.0
    %124 = vmatpush1.msra.mxu0 0.0
    %125 = vmatprep.subr.mxu0 0.0
    %126 = vmatpush1.msra.mxu0 0.0
    %127 = vmatprep.subr.mxu0 0.0
    %128 = vmatpush1.msra.mxu0 0.0
    %129 = vmatprep.subr.mxu0 0.0
    %130 = vmatpush1.msra.mxu0 0.0
    %131 = vmatprep.subr.mxu0 0.0
    %132 = vmatpush1.msra.mxu0 0.0
    %133 = vmatprep.subr.mxu0 0.0
    %134 = vmatpush1.msra.mxu0 0.0
    %135 = vmatprep.subr.mxu0 0.0
    %136 = vmatpush1.msra.mxu0 0.0
    %137 = vmatprep.subr.mxu0 0.0
    %138 = vmatpush1.msra.mxu0 0.0
    %139 = vmatprep.subr.mxu0 0.0
    %140 = vmatpush1.msra.mxu0 0.0
    %141 = vmatprep.subr.mxu0 0.0
    %142 = vmatpush1.msra.mxu0 0.0
    %143 = vmatprep.subr.mxu0 0.0
    %144 = vmatpush1.msra.mxu0 0.0
    %145 = vmatprep.mubr.f32.mxu0 0.0
    %146 = vmatmul.mubr.f32.gmra.mrb[0].mxu0 %v76
    %v147 = vpop.f32.mrb[0].mxu0
    %v148 = vadd.f32 %v72, %v147
    %v149 = vpop.f32.mrb[0].mxu0
    %150 = vmatprep.mubr.f32.mxu0 0.0
    %151 = vmatmul.mubr.f32.gmra.mrb[0].mxu0 %v79
    %v152 = vpop.f32.mrb[0].mxu0
    %v153 = vadd.f32 %v72, %v152
    %v154 = vpop.f32.mrb[0].mxu0
    %155 = vdwg.mxu0
    %vm156 = vcmp.gt.f32.partialorder %v148, 0.0
    %vm157 = vcmp.gt.f32.partialorder %v153, 0.0
    %v158 = vmul.f32 %v148, 0.01
    %v159 = vmul.f32 %v153, 0.01
    %v160 = vsel %vm156, %v148, %v158
    %v161 = vsel %vm157, %v153, %v159
    %v162 = vld [vmem:[#allocation6] sm:$0xff]
    %v163 = vld [vmem:[#allocation6 + $0x8] sm:$0xff]
    %v164 = vld [vmem:[#allocation6 + $0x10] sm:$0xff]
    %v165 = vld [vmem:[#allocation6 + $0x18] sm:$0xff]
    %v166 = vld [vmem:[#allocation6 + $0x20] sm:$0xff]
    %v167 = vld [vmem:[#allocation6 + $0x28] sm:$0xff]
    %v168 = vld [vmem:[#allocation6 + $0x30] sm:$0xff]
    %v169 = vld [vmem:[#allocation6 + $0x38] sm:$0xff]
    %v170 = vld [vmem:[%s4] sm:$0x1]
    %v172 = vlaneseq
    %v173 = vshrl.u32 %v172, 7
    %v174 = vsub.s32 0, %v173
    %v175 = vrot.slane %v170, %v174
    %vm177 = vcmask 523264
    %v179 = vsel %vm177, %v160, 0
    %v182 = vsel %vm177, %v161, 0
    %184 = vmatprep.subr.mxu0 0.0
    %185 = vmatpush1.msra.mxu0 %v162
    %186 = vmatprep.subr.mxu0 0.0
    %187 = vmatpush1.msra.mxu0 %v163
    %188 = vmatprep.subr.mxu0 0.0
    %189 = vmatpush1.msra.mxu0 %v164
    %190 = vmatprep.subr.mxu0 0.0
    %191 = vmatpush1.msra.mxu0 %v165
    %192 = vmatprep.subr.mxu0 0.0
    %193 = vmatpush1.msra.mxu0 %v166
    %194 = vmatprep.subr.mxu0 0.0
    %195 = vmatpush1.msra.mxu0 %v167
    %196 = vmatprep.subr.mxu0 0.0
    %197 = vmatpush1.msra.mxu0 %v168
    %198 = vmatprep.subr.mxu0 0.0
    %199 = vmatpush1.msra.mxu0 %v169
    %200 = vmatprep.subr.mxu0 0.0
    %201 = vmatpush1.msra.mxu0 0.0
    %202 = vmatprep.subr.mxu0 0.0
    %203 = vmatpush1.msra.mxu0 0.0
    %204 = vmatprep.subr.mxu0 0.0
    %205 = vmatpush1.msra.mxu0 0.0
    %206 = vmatprep.subr.mxu0 0.0
    %207 = vmatpush1.msra.mxu0 0.0
    %208 = vmatprep.subr.mxu0 0.0
    %209 = vmatpush1.msra.mxu0 0.0
    %210 = vmatprep.subr.mxu0 0.0
    %211 = vmatpush1.msra.mxu0 0.0
    %212 = vmatprep.subr.mxu0 0.0
    %213 = vmatpush1.msra.mxu0 0.0
    %214 = vmatprep.subr.mxu0 0.0
    %215 = vmatpush1.msra.mxu0 0.0
    %216 = vmatprep.subr.mxu0 0.0
    %217 = vmatpush1.msra.mxu0 0.0
    %218 = vmatprep.subr.mxu0 0.0
    %219 = vmatpush1.msra.mxu0 0.0
    %220 = vmatprep.subr.mxu0 0.0
    %221 = vmatpush1.msra.mxu0 0.0
    %222 = vmatprep.subr.mxu0 0.0
    %223 = vmatpush1.msra.mxu0 0.0
    %224 = vmatprep.subr.mxu0 0.0
    %225 = vmatpush1.msra.mxu0 0.0
    %226 = vmatprep.subr.mxu0 0.0
    %227 = vmatpush1.msra.mxu0 0.0
    %228 = vmatprep.subr.mxu0 0.0
    %229 = vmatpush1.msra.mxu0 0.0
    %230 = vmatprep.subr.mxu0 0.0
    %231 = vmatpush1.msra.mxu0 0.0
    %232 = vmatprep.subr.mxu0 0.0
    %233 = vmatpush1.msra.mxu0 0.0
    %234 = vmatprep.subr.mxu0 0.0
    %235 = vmatpush1.msra.mxu0 0.0
    %236 = vmatprep.subr.mxu0 0.0
    %237 = vmatpush1.msra.mxu0 0.0
    %238 = vmatprep.subr.mxu0 0.0
    %239 = vmatpush1.msra.mxu0 0.0
    %240 = vmatprep.subr.mxu0 0.0
    %241 = vmatpush1.msra.mxu0 0.0
    %242 = vmatprep.subr.mxu0 0.0
    %243 = vmatpush1.msra.mxu0 0.0
    %244 = vmatprep.subr.mxu0 0.0
    %245 = vmatpush1.msra.mxu0 0.0
    %246 = vmatprep.subr.mxu0 0.0
    %247 = vmatpush1.msra.mxu0 0.0
    %248 = vmatprep.mubr.f32.mxu0 0.0
    %249 = vmatmul.mubr.f32.gmra.mrb[0].mxu0 %v179
    %v250 = vpop.f32.mrb[0].mxu0
    %v251 = vadd.f32 %v175, %v250
    %v252 = vpop.f32.mrb[0].mxu0
    %253 = vmatprep.mubr.f32.mxu0 0.0
    %254 = vmatmul.mubr.f32.gmra.mrb[0].mxu0 %v182
    %v255 = vpop.f32.mrb[0].mxu0
    %v256 = vadd.f32 %v175, %v255
    %v257 = vpop.f32.mrb[0].mxu0
    %258 = vdwg.mxu0
    %259 = vst.msk [vmem:[%s5] sm:$0xff] %vm177, %v251
    %260 = vst.msk [vmem:[%s5 + $0x8] sm:$0xff] %vm177, %v256
    // Predicated region
    $region34: #{patch_forward.1} parent=1 // pred_check
      _
    $region35: #{patch_forward.1} parent=1 // pred_check_branch
      %262 = sbr.rel (0) target = $region37
    $region36: #{patch_forward.1} parent=1 // pred_region
      _
    $region37: #{patch_forward.1} parent=1 // pred_fallthru
      _
    // Predicated region
    $region38: #{patch_forward.1} parent=1 // pred_check
      _
    $region39: #{patch_forward.1} parent=1 // pred_check_branch
      %264 = sbr.rel (0) target = $region41
    $region40: #{patch_forward.1} parent=1 // pred_region
      _
    $region41: #{patch_forward.1} parent=1 // pred_fallthru
      _
    %265 = vsyncpa [#allocation3], 1
    %266 = vsyncpa [#allocation5], 1

</llo_original>
